<compile_context>
chip_gen: v7x
topology: tpu7x:2x2x1
jax: 0.10.0
libtpu: 0.0.40
codegen_flags: <defaults>
</compile_context>

<pallas_src>
import functools

import jax
import jax.numpy as jnp
from jax.experimental import pallas as pl
from jax.experimental.pallas import tpu as pltpu

EPS = 1e-5

# Branch conv geometries of MultiScaleLayer_v2: (shift axis, kernel length)
#   scale1: (1,3) -> W axis, K=3 ; scale2: (3,1) -> H axis, K=3
#   scale3: (1,5) -> W axis, K=5 ; scale4: (5,1) -> H axis, K=5
_BRANCHES = (("w", 3), ("h", 3), ("w", 5), ("h", 5))


def _shift_table():
    """Ordered list of distinct (axis, offset) spatial shifts used by all taps."""
    shifts = []
    for axis, K in _BRANCHES:
        r = K // 2
        for j in range(K):
            key = (axis, j - r)
            if key[1] == 0:
                key = ("w", 0)          # identity shift is shared by all branches
            if key not in shifts:
                shifts.append(key)
    return tuple(shifts)


_SHIFTS = _shift_table()                # 9 distinct shifts for (1,3)/(3,1)/(1,5)/(5,1)
_S = len(_SHIFTS)
_BIAS_PAD = 8                           # 1 ones row (bias) + 7 zero rows -> 8-aligned K


# --------------------------------------------------------------------------- #
# Kernel
# --------------------------------------------------------------------------- #
def _msl_kernel(x_ref, mask_ref, wblk_ref, wcls_ref, bcls_ref, pool_ref,
                out_ref, stk_ref, *, W):
    """Fused multi-scale conv + BN2d + ReLU + GAP + BN1d + classifier.

    x_ref:    (C, N)      N = block_b*H*W, batch concatenated along lanes
    mask_ref: (S, N)      {0,1} per-shift boundary masks (work dtype)
    wblk_ref: (C, Kpad)   block conv weight, BN2d scale folded; col S*C = BN2d bias
    wcls_ref: (NC, C)     classifier weight with BN1d scale folded in (f32)
    bcls_ref: (NC, 1)     classifier bias from folded BN1d (f32)
    pool_ref: (N, bb)     block-diagonal GAP matrix with 1/HW entries (f32)
    out_ref:  (1, NC, bb)
    stk_ref:  (Kpad, N)   VMEM scratch: stacked MXU operand
    """
    C, N = x_ref.shape
    Kpad = stk_ref.shape[0]
    SC = _S * C

    xs = x_ref[...]
    if xs.dtype != mask_ref.dtype:          # v5e path: bf16 is storage-only
        xs = xs.astype(mask_ref.dtype)

    # Write the 9 shifted/masked copies straight into scratch (bounds live
    # ranges, no concatenate).  Shifts are XLU lane rotations; masks kill
    # pixels that crossed an image-row / image / slab boundary.
    for s, (axis, d) in enumerate(_SHIFTS):
        if d == 0:
            part = xs
        else:
            step = d if axis == "w" else d * W
            part = pltpu.roll(xs, (-step) % N, 1) * mask_ref[s:s + 1, :]
        if part.dtype != stk_ref.dtype:
            part = part.astype(stk_ref.dtype)
        stk_ref[s * C:(s + 1) * C, :] = part

    # Bias block: one ones row (multiplies the folded BN2d-bias column of wblk)
    # followed by zero rows up to the 8-aligned Kpad.
    pad_rows = Kpad - SC
    stk_ref[SC:Kpad, :] = (
        jax.lax.broadcasted_iota(jnp.int32, (pad_rows, N), 0) == 0
    ).astype(stk_ref.dtype)

    # All 4 branches + all taps + BN2d scale & bias in ONE MXU matmul, then ReLU.
    y = jnp.maximum(
        jnp.dot(wblk_ref[...], stk_ref[...], preferred_element_type=jnp.float32),
        0.0)                                                          # (C, N) f32

    # Global average pool per image via a block-diagonal 1/HW matmul (no reshape).
    pooled = jnp.dot(y, pool_ref[...], preferred_element_type=jnp.float32)  # (C, bb)

    # Folded BN1d + classifier, batched over the whole block in one matmul.
    out_ref[0] = (jnp.dot(wcls_ref[...], pooled,
                          preferred_element_type=jnp.float32) + bcls_ref[...])


# --------------------------------------------------------------------------- #
# Wrapper
# --------------------------------------------------------------------------- #
def _fold_bn(gamma, beta, mean, var):
    scale = gamma / jnp.sqrt(var + EPS)
    return scale, beta - mean * scale


def _boundary_mask_rows(block_b, H, W, dtype):
    """(S, block_b*H*W) {0,1} masks; lane order is batch-major (b, row, col)."""
    HW = H * W
    lane = jnp.arange(block_b * HW, dtype=jnp.int32)
    col = lane % W
    row = (lane // W) % H            # modulo H: do not leak across image seams
    rows = []
    for axis, d in _SHIFTS:
        if d == 0:
            rows.append(jnp.ones_like(lane))
        elif axis == "w":
            rows.append(((col + d >= 0) & (col + d < W)).astype(jnp.int32))
        else:
            rows.append(((row + d >= 0) & (row + d < H)).astype(jnp.int32))
    return jnp.stack(rows, axis=0).astype(dtype)


def _device_kind():
    try:
        return jax.devices()[0].device_kind.lower()
    except Exception:
        return ""


def _vmem_policy(kind):
    """(per-step block budget, explicit scoped-VMEM limit) per TPU generation."""
    if "7x" in kind or "v7" in kind:
        return 24 << 20, 32 << 20          # v7x: 64 MiB physical, keep blocks modest
    if "v6" in kind or "v5" in kind:
        return 48 << 20, 64 << 20          # 128 MiB parts: bigger lane slabs
    return 16 << 20, None                  # unknown / older chips: stay conservative


def _pick_block_b(B, C, HW, in_bytes, work_bytes, stk_bytes, budget):
    """Largest batch block that fits the VMEM budget while keeping >=2 grid
    steps per v7x TensorCore (>=4 total when B allows) and lane-aligned blocks."""
    Kpad = _S * C + _BIAS_PAD
    target_steps = min(B, 4)
    best = B                               # full-batch block is always legal
    for bb in range(B, 0, -1):
        if B % bb:
            continue
        if (bb * HW) % 128 and bb != B:    # keep input lane blocks 128-aligned
            continue
        N = bb * HW
        est = (2 * C * N * in_bytes        # double-buffered x block
               + Kpad * N * stk_bytes      # stacked scratch operand
               + 2 * C * N * 4             # f32 conv output + temps
               + C * N * work_bytes        # possible f32 upcast copy (v5e path)
               + _S * N * work_bytes       # boundary masks
               + N * bb * 4)               # pooling matrix
        if est > budget:
            continue
        best = bb
        if B // bb >= target_steps:
            break
    return best


def multi_scale_layer_v2(x_nchw, params, *, block_b=None, use_bf16=None):
    B, C, H, W = map(int, x_nchw.shape)
    Cg = C // 4
    HW = H * W
    NC = int(params["cls_w"].shape[0])
    SC = _S * C
    Kpad = SC + _BIAS_PAD

    kind = _device_kind()
    if use_bf16 is None:
        use_bf16 = any(t in kind for t in ("v5", "v6", "v7", "7x"))
    if use_bf16:
        storage_dt = jnp.bfloat16                  # HBM/DMA format for x
        mxu_dt = jnp.bfloat16                      # MXU operands (f32 accumulation)
        # v5e (and older) have no bf16 VPU: keep elementwise work in f32.
        work_dt = jnp.bfloat16 if any(t in kind for t in ("v6", "v7", "7x")) \
            else jnp.float32
    else:
        storage_dt = mxu_dt = work_dt = jnp.float32

    # ---- fold eval-mode BN2d into a block conv weight + bias column ---------
    scales, biases = [], []
    for g in range(4):
        s, b = _fold_bn(*params["bn"][g])
        scales.append(s)
        biases.append(b)
    bn_scale = jnp.concatenate(scales)                       # (C,)
    bn_bias = jnp.concatenate(biases)                        # (C,)

    wblk = jnp.zeros((C, SC), jnp.float32)
    for g, (axis, K) in enumerate(_BRANCHES):
        w = params["conv_w"][g].astype(jnp.float32)          # (Cg, Cg, kh, kw) OIHW
        taps = w[:, :, 0, :] if axis == "w" else w[:, :, :, 0]  # (Cg_out, Cg_in, K)
        r = K // 2
        for j in range(K):
            key = (axis, j - r) if j != r else ("w", 0)
            s_idx = _SHIFTS.index(key)
            wblk = wblk.at[g * Cg:(g + 1) * Cg,
                           s_idx * C + g * Cg: s_idx * C + (g + 1) * Cg].set(taps[:, :, j])
    wblk = wblk * bn_scale[:, None]                          # fold BN2d scale
    wblk_full = jnp.concatenate(                             # fold BN2d bias as a column
        [wblk, bn_bias[:, None], jnp.zeros((C, _BIAS_PAD - 1), jnp.float32)],
        axis=1).astype(mxu_dt)                               # (C, Kpad)

    # ---- fold eval-mode BN1d into the classifier -----------------------------
    s1d, b1d = _fold_bn(*params["bn1d"])
    cls_w = params["cls_w"].astype(jnp.float32)
    wcls = cls_w * s1d[None, :]                              # (NC, C)
    bcls = (cls_w @ b1d).reshape(NC, 1)                      # (NC, 1)

    # ---- generation-aware tiling ---------------------------------------------
    in_bytes = 2 if storage_dt == jnp.bfloat16 else 4
    work_bytes = 2 if work_dt == jnp.bfloat16 else 4
    stk_bytes = 2 if mxu_dt == jnp.bfloat16 else 4
    budget, vmem_limit = _vmem_policy(kind)
    if block_b is None:
        block_b = _pick_block_b(B, C, HW, in_bytes, work_bytes, stk_bytes, budget)
    block_b = max(1, min(int(block_b), B))
    while B % block_b:
        block_b -= 1
    if (block_b * HW) % 128 and block_b != B:
        block_b = B                                          # keep lane blocks legal
    G = B // block_b
    N = block_b * HW

    # channels-in-sublanes / (batch, spatial)-in-lanes slab
    x_slab = x_nchw.reshape(B, C, HW).transpose(1, 0, 2).reshape(C, B * HW)
    x_slab = x_slab.astype(storage_dt)
    mask = _boundary_mask_rows(block_b, H, W, work_dt)       # (S, N)
    pool = (jnp.kron(jnp.eye(block_b, dtype=jnp.float32),
                     jnp.ones((HW, 1), jnp.float32)) / float(HW))  # (N, block_b)

    def _full(shape):
        n = len(shape)
        return pl.BlockSpec(shape, lambda i: (0,) * n)

    cp_kwargs = dict(dimension_semantics=("parallel",))
    if vmem_limit is not None:
        cp_kwargs["vmem_limit_bytes"] = int(vmem_limit)

    out = pl.pallas_call(
        functools.partial(_msl_kernel, W=W),
        out_shape=jax.ShapeDtypeStruct((G, NC, block_b), jnp.float32),
        grid=(G,),
        in_specs=[pl.BlockSpec((C, N), lambda i: (0, i)),
                  _full((_S, N)), _full((C, Kpad)), _full((NC, C)),
                  _full((NC, 1)), _full((N, block_b))],
        out_specs=pl.BlockSpec((1, NC, block_b), lambda i: (i, 0, 0)),
        scratch_shapes=[pltpu.VMEM((Kpad, N), mxu_dt)],
        compiler_params=pltpu.CompilerParams(**cp_kwargs),
    )(x_slab, mask, wblk_full, wcls, bcls, pool)
    return out.transpose(0, 2, 1).reshape(B, NC)


# --------------------------------------------------------------------------- #
# Pure-JAX reference (eval-mode BN), mirroring the PyTorch forward
# --------------------------------------------------------------------------- #
def reference(x_nchw, params):
    chunks = jnp.split(x_nchw, 4, axis=1)
    outs = []
    for g in range(4):
        w = params["conv_w"][g]
        kh, kw = int(w.shape[2]), int(w.shape[3])
        y = jax.lax.conv_general_dilated(
            chunks[g], w, window_strides=(1, 1),
            padding=((kh // 2, kh // 2), (kw // 2, kw // 2)),
            dimension_numbers=("NCHW", "OIHW", "NCHW"))
        gamma, beta, mean, var = params["bn"][g]
        y = (y - mean[None, :, None, None]) / jnp.sqrt(var + EPS)[None, :, None, None] \
            * gamma[None, :, None, None] + beta[None, :, None, None]
        outs.append(jnp.maximum(y, 0.0))
    y = jnp.concatenate(outs, axis=1)
    f = jnp.mean(y, axis=(2, 3))
    g2, b2, m2, v2 = params["bn1d"]
    f = (f - m2) / jnp.sqrt(v2 + EPS) * g2 + b2
    return f @ params["cls_w"].T


if __name__ == "__main__":
    B, C, H, W = 2, 16, 16, 16       # in_planes = 16
    NC = 8                           # num_classes
    Cg = C // 4

    key = jax.random.PRNGKey(0)
    ks = jax.random.split(key, 16)

    x = jax.random.normal(ks[0], (B, C, H, W), jnp.float32)

    conv_shapes = [(Cg, Cg, 1, 3), (Cg, Cg, 3, 1), (Cg, Cg, 1, 5), (Cg, Cg, 5, 1)]
    conv_w = [0.2 * jax.random.normal(ks[1 + g], s, jnp.float32)
              for g, s in enumerate(conv_shapes)]

    bn = []
    for g in range(4):
        kk = jax.random.split(ks[5 + g], 4)
        bn.append((jax.random.uniform(kk[0], (Cg,), jnp.float32, 0.5, 1.5),   # gamma
                   0.1 * jax.random.normal(kk[1], (Cg,), jnp.float32),        # beta
                   0.1 * jax.random.normal(kk[2], (Cg,), jnp.float32),        # running_mean
                   jax.random.uniform(kk[3], (Cg,), jnp.float32, 0.5, 1.5)))  # running_var

    kk = jax.random.split(ks[9], 4)
    bn1d = (jax.random.uniform(kk[0], (C,), jnp.float32, 0.5, 1.5),
            0.1 * jax.random.normal(kk[1], (C,), jnp.float32),
            0.1 * jax.random.normal(kk[2], (C,), jnp.float32),
            jax.random.uniform(kk[3], (C,), jnp.float32, 0.5, 1.5))

    cls_w = 0.05 * jax.random.normal(ks[10], (NC, C), jnp.float32)

    params = {"conv_w": conv_w, "bn": bn, "bn1d": bn1d, "cls_w": cls_w}

    ref = jax.block_until_ready(reference(x, params))

    # f32 path: tight tolerance
    out = jax.block_until_ready(multi_scale_layer_v2(x, params, use_bf16=False))
    assert out.shape == (B, NC), out.shape
    assert jnp.allclose(out, ref, rtol=2e-3, atol=2e-3), (out, ref)

    # bf16 storage/MXU path (f32 accumulation): loose tolerance
    out_bf16 = jax.block_until_ready(multi_scale_layer_v2(x, params, use_bf16=True))
    assert out_bf16.shape == (B, NC), out_bf16.shape
    assert jnp.allclose(out_bf16, ref, rtol=5e-2, atol=5e-2), (out_bf16, ref)

    print("KERNEL_OK")
</pallas_src>

<mosaic_0001>
module attributes {stable_mosaic.version = 11 : i64} {
  func.func @_msl_kernel(%arg0: i32, %arg1: memref<16x256xf32, #tpu.memory_space<vmem>>, %arg2: memref<9x256xf32, #tpu.memory_space<vmem>>, %arg3: memref<16x152xf32, #tpu.memory_space<vmem>>, %arg4: memref<8x16xf32, #tpu.memory_space<vmem>>, %arg5: memref<8x1xf32, #tpu.memory_space<vmem>>, %arg6: memref<256x1xf32, #tpu.memory_space<vmem>>, %arg7: memref<1x8x1xf32, #tpu.memory_space<vmem>>, %arg8: memref<152x256xf32, #tpu.memory_space<vmem>>) attributes {dimension_semantics = [#tpu.dimension_semantics<parallel>], iteration_bounds = array<i64: 2>, scalar_prefetch = 0 : i64, scratch_operands = 1 : i64, tpu.core_type = #tpu.core_type<tc>, window_params = [{transform_indices = @transform_0, window_bounds = array<i64: 16, 256>}, {pipeline_mode = #tpu.pipeline_mode<synchronous>, transform_indices = @transform_1, window_bounds = array<i64: 9, 256>}, {pipeline_mode = #tpu.pipeline_mode<synchronous>, transform_indices = @transform_2, window_bounds = array<i64: 16, 152>}, {pipeline_mode = #tpu.pipeline_mode<synchronous>, transform_indices = @transform_3, window_bounds = array<i64: 8, 16>}, {pipeline_mode = #tpu.pipeline_mode<synchronous>, transform_indices = @transform_4, window_bounds = array<i64: 8, 1>}, {pipeline_mode = #tpu.pipeline_mode<synchronous>, transform_indices = @transform_5, window_bounds = array<i64: 256, 1>}, {transform_indices = @transform_6, window_bounds = array<i64: 1, 8, 1>}]} {
    %c0 = arith.constant 0 : index
    %c0_0 = arith.constant 0 : index
    %0 = vector.load %arg1[%c0, %c0_0] : memref<16x256xf32, #tpu.memory_space<vmem>>, vector<16x256xf32>
    %c1_i32 = arith.constant 1 : i32
    %1 = tpu.dynamic_rotate %0 by %c1_i32 dim 1 : vector<16x256xf32>, i32 -> vector<16x256xf32>
    %c0_1 = arith.constant 0 : index
    %c0_2 = arith.constant 0 : index
    %2 = vector.load %arg2[%c0_1, %c0_2] : memref<9x256xf32, #tpu.memory_space<vmem>>, vector<1x256xf32>
    %3 = vector.broadcast %2 : vector<1x256xf32> to vector<16x256xf32>
    %4 = arith.mulf %1, %3 : vector<16x256xf32>
    %c0_3 = arith.constant 0 : index
    %c0_4 = arith.constant 0 : index
    %5 = vector.load %arg8[%c0_3, %c0_4] : memref<152x256xf32, #tpu.memory_space<vmem>>, vector<16x256xf32>
    tpu.vector_store %arg8[%c0_3, %c0_4], %4 {strides = array<i32>} : memref<152x256xf32, #tpu.memory_space<vmem>>, vector<16x256xf32>,
    %c16 = arith.constant 16 : index
    %c0_5 = arith.constant 0 : index
    %6 = vector.load %arg8[%c16, %c0_5] : memref<152x256xf32, #tpu.memory_space<vmem>>, vector<16x256xf32>
    tpu.vector_store %arg8[%c16, %c0_5], %0 {strides = array<i32>} : memref<152x256xf32, #tpu.memory_space<vmem>>, vector<16x256xf32>,
    %c255_i32 = arith.constant 255 : i32
    %7 = tpu.dynamic_rotate %0 by %c255_i32 dim 1 : vector<16x256xf32>, i32 -> vector<16x256xf32>
    %c2 = arith.constant 2 : index
    %c0_6 = arith.constant 0 : index
    %8 = vector.load %arg2[%c2, %c0_6] : memref<9x256xf32, #tpu.memory_space<vmem>>, vector<1x256xf32>
    %9 = vector.broadcast %8 : vector<1x256xf32> to vector<16x256xf32>
    %10 = arith.mulf %7, %9 : vector<16x256xf32>
    %c32 = arith.constant 32 : index
    %c0_7 = arith.constant 0 : index
    %11 = vector.load %arg8[%c32, %c0_7] : memref<152x256xf32, #tpu.memory_space<vmem>>, vector<16x256xf32>
    tpu.vector_store %arg8[%c32, %c0_7], %10 {strides = array<i32>} : memref<152x256xf32, #tpu.memory_space<vmem>>, vector<16x256xf32>,
    %c16_i32 = arith.constant 16 : i32
    %12 = tpu.dynamic_rotate %0 by %c16_i32 dim 1 : vector<16x256xf32>, i32 -> vector<16x256xf32>
    %c3 = arith.constant 3 : index
    %c0_8 = arith.constant 0 : index
    %13 = vector.load %arg2[%c3, %c0_8] : memref<9x256xf32, #tpu.memory_space<vmem>>, vector<1x256xf32>
    %14 = vector.broadcast %13 : vector<1x256xf32> to vector<16x256xf32>
    %15 = arith.mulf %12, %14 : vector<16x256xf32>
    %c48 = arith.constant 48 : index
    %c0_9 = arith.constant 0 : index
    %16 = vector.load %arg8[%c48, %c0_9] : memref<152x256xf32, #tpu.memory_space<vmem>>, vector<16x256xf32>
    tpu.vector_store %arg8[%c48, %c0_9], %15 {strides = array<i32>} : memref<152x256xf32, #tpu.memory_space<vmem>>, vector<16x256xf32>,
    %c240_i32 = arith.constant 240 : i32
    %17 = tpu.dynamic_rotate %0 by %c240_i32 dim 1 : vector<16x256xf32>, i32 -> vector<16x256xf32>
    %c4 = arith.constant 4 : index
    %c0_10 = arith.constant 0 : index
    %18 = vector.load %arg2[%c4, %c0_10] : memref<9x256xf32, #tpu.memory_space<vmem>>, vector<1x256xf32>
    %19 = vector.broadcast %18 : vector<1x256xf32> to vector<16x256xf32>
    %20 = arith.mulf %17, %19 : vector<16x256xf32>
    %c64 = arith.constant 64 : index
    %c0_11 = arith.constant 0 : index
    %21 = vector.load %arg8[%c64, %c0_11] : memref<152x256xf32, #tpu.memory_space<vmem>>, vector<16x256xf32>
    tpu.vector_store %arg8[%c64, %c0_11], %20 {strides = array<i32>} : memref<152x256xf32, #tpu.memory_space<vmem>>, vector<16x256xf32>,
    %c2_i32 = arith.constant 2 : i32
    %22 = tpu.dynamic_rotate %0 by %c2_i32 dim 1 : vector<16x256xf32>, i32 -> vector<16x256xf32>
    %c5 = arith.constant 5 : index
    %c0_12 = arith.constant 0 : index
    %23 = vector.load %arg2[%c5, %c0_12] : memref<9x256xf32, #tpu.memory_space<vmem>>, vector<1x256xf32>
    %24 = vector.broadcast %23 : vector<1x256xf32> to vector<16x256xf32>
    %25 = arith.mulf %22, %24 : vector<16x256xf32>
    %c80 = arith.constant 80 : index
    %c0_13 = arith.constant 0 : index
    %26 = vector.load %arg8[%c80, %c0_13] : memref<152x256xf32, #tpu.memory_space<vmem>>, vector<16x256xf32>
    tpu.vector_store %arg8[%c80, %c0_13], %25 {strides = array<i32>} : memref<152x256xf32, #tpu.memory_space<vmem>>, vector<16x256xf32>,
    %c254_i32 = arith.constant 254 : i32
    %27 = tpu.dynamic_rotate %0 by %c254_i32 dim 1 : vector<16x256xf32>, i32 -> vector<16x256xf32>
    %c6 = arith.constant 6 : index
    %c0_14 = arith.constant 0 : index
    %28 = vector.load %arg2[%c6, %c0_14] : memref<9x256xf32, #tpu.memory_space<vmem>>, vector<1x256xf32>
    %29 = vector.broadcast %28 : vector<1x256xf32> to vector<16x256xf32>
    %30 = arith.mulf %27, %29 : vector<16x256xf32>
    %c96 = arith.constant 96 : index
    %c0_15 = arith.constant 0 : index
    %31 = vector.load %arg8[%c96, %c0_15] : memref<152x256xf32, #tpu.memory_space<vmem>>, vector<16x256xf32>
    tpu.vector_store %arg8[%c96, %c0_15], %30 {strides = array<i32>} : memref<152x256xf32, #tpu.memory_space<vmem>>, vector<16x256xf32>,
    %c32_i32 = arith.constant 32 : i32
    %32 = tpu.dynamic_rotate %0 by %c32_i32 dim 1 : vector<16x256xf32>, i32 -> vector<16x256xf32>
    %c7 = arith.constant 7 : index
    %c0_16 = arith.constant 0 : index
    %33 = vector.load %arg2[%c7, %c0_16] : memref<9x256xf32, #tpu.memory_space<vmem>>, vector<1x256xf32>
    %34 = vector.broadcast %33 : vector<1x256xf32> to vector<16x256xf32>
    %35 = arith.mulf %32, %34 : vector<16x256xf32>
    %c112 = arith.constant 112 : index
    %c0_17 = arith.constant 0 : index
    %36 = vector.load %arg8[%c112, %c0_17] : memref<152x256xf32, #tpu.memory_space<vmem>>, vector<16x256xf32>
    tpu.vector_store %arg8[%c112, %c0_17], %35 {strides = array<i32>} : memref<152x256xf32, #tpu.memory_space<vmem>>, vector<16x256xf32>,
    %c224_i32 = arith.constant 224 : i32
    %37 = tpu.dynamic_rotate %0 by %c224_i32 dim 1 : vector<16x256xf32>, i32 -> vector<16x256xf32>
    %c8 = arith.constant 8 : index
    %c0_18 = arith.constant 0 : index
    %38 = vector.load %arg2[%c8, %c0_18] : memref<9x256xf32, #tpu.memory_space<vmem>>, vector<1x256xf32>
    %39 = vector.broadcast %38 : vector<1x256xf32> to vector<16x256xf32>
    %40 = arith.mulf %37, %39 : vector<16x256xf32>
    %c128 = arith.constant 128 : index
    %c0_19 = arith.constant 0 : index
    %41 = vector.load %arg8[%c128, %c0_19] : memref<152x256xf32, #tpu.memory_space<vmem>>, vector<16x256xf32>
    tpu.vector_store %arg8[%c128, %c0_19], %40 {strides = array<i32>} : memref<152x256xf32, #tpu.memory_space<vmem>>, vector<16x256xf32>,
    %42 = tpu.iota {dimensions = array<i32: 0>} : vector<8x256xi32>
    %c0_i32 = arith.constant 0 : i32
    %43 = vector.broadcast %c0_i32 : i32 to vector<8x256xi32>
    %44 = arith.cmpi eq, %42, %43 : vector<8x256xi32>
    %45 = arith.extui %44 : vector<8x256xi1> to vector<8x256xi32>
    %46 = arith.sitofp %45 : vector<8x256xi32> to vector<8x256xf32>
    %c144 = arith.constant 144 : index
    %c0_20 = arith.constant 0 : index
    %47 = vector.load %arg8[%c144, %c0_20] : memref<152x256xf32, #tpu.memory_space<vmem>>, vector<8x256xf32>
    tpu.vector_store %arg8[%c144, %c0_20], %46 {strides = array<i32>} : memref<152x256xf32, #tpu.memory_space<vmem>>, vector<8x256xf32>,
    %c0_21 = arith.constant 0 : index
    %c0_22 = arith.constant 0 : index
    %48 = vector.load %arg3[%c0_21, %c0_22] : memref<16x152xf32, #tpu.memory_space<vmem>>, vector<16x152xf32>
    %c0_23 = arith.constant 0 : index
    %c0_24 = arith.constant 0 : index
    %49 = vector.load %arg8[%c0_23, %c0_24] : memref<152x256xf32, #tpu.memory_space<vmem>>, vector<152x256xf32>
    %cst = arith.constant dense<0.000000e+00> : vector<16x256xf32>
    %50 = tpu.matmul %48, %49, %cst {dimension_numbers = #tpu.dot_dimension_numbers<[1], [0], [0], [1], [0, 0, 1, 1], [], []>} : vector<16x152xf32>, vector<152x256xf32>, vector<16x256xf32> -> vector<16x256xf32>
    %cst_25 = arith.constant 0.000000e+00 : f32
    %51 = vector.broadcast %cst_25 : f32 to vector<16x256xf32>
    %52 = arith.maximumf %50, %51 : vector<16x256xf32>
    %c0_26 = arith.constant 0 : index
    %c0_27 = arith.constant 0 : index
    %53 = vector.load %arg6[%c0_26, %c0_27] : memref<256x1xf32, #tpu.memory_space<vmem>>, vector<256x1xf32>
    %cst_28 = arith.constant dense<0.000000e+00> : vector<16x1xf32>
    %54 = tpu.matmul %52, %53, %cst_28 {dimension_numbers = #tpu.dot_dimension_numbers<[1], [0], [0], [1], [0, 0, 1, 1], [], []>} : vector<16x256xf32>, vector<256x1xf32>, vector<16x1xf32> -> vector<16x1xf32>
    %c0_29 = arith.constant 0 : index
    %c0_30 = arith.constant 0 : index
    %55 = vector.load %arg4[%c0_29, %c0_30] : memref<8x16xf32, #tpu.memory_space<vmem>>, vector<8x16xf32>
    %cst_31 = arith.constant dense<0.000000e+00> : vector<8x1xf32>
    %56 = tpu.matmul %55, %54, %cst_31 {dimension_numbers = #tpu.dot_dimension_numbers<[1], [0], [0], [1], [0, 0, 1, 1], [], []>} : vector<8x16xf32>, vector<16x1xf32>, vector<8x1xf32> -> vector<8x1xf32>
    %c0_32 = arith.constant 0 : index
    %c0_33 = arith.constant 0 : index
    %57 = vector.load %arg5[%c0_32, %c0_33] : memref<8x1xf32, #tpu.memory_space<vmem>>, vector<8x1xf32>
    %58 = arith.addf %56, %57 : vector<8x1xf32>
    %c0_34 = arith.constant 0 : index
    %c0_35 = arith.constant 0 : index
    %c0_36 = arith.constant 0 : index
    %59 = vector.load %arg7[%c0_34, %c0_35, %c0_36] : memref<1x8x1xf32, #tpu.memory_space<vmem>>, vector<1x8x1xf32>
    %60 = vector.shape_cast %59 : vector<1x8x1xf32> to vector<8x1xf32>
    %61 = vector.shape_cast %58 : vector<8x1xf32> to vector<1x8x1xf32>
    tpu.vector_store %arg7[%c0_34, %c0_35, %c0_36], %61 {strides = array<i32>} : memref<1x8x1xf32, #tpu.memory_space<vmem>>, vector<1x8x1xf32>,
    return
  }
  func.func @transform_0(%arg0: i32) -> (i32, i32) {
    %c0_i32 = arith.constant 0 : i32
    %c0_i32_0 = arith.constant 0 : i32
    return %c0_i32, %arg0 : i32, i32
  }
  func.func @transform_1(%arg0: i32) -> (i32, i32) {
    %c0_i32 = arith.constant 0 : i32
    %c0_i32_0 = arith.constant 0 : i32
    %c0_i32_1 = arith.constant 0 : i32
    return %c0_i32, %c0_i32_0 : i32, i32
  }
  func.func @transform_2(%arg0: i32) -> (i32, i32) {
    %c0_i32 = arith.constant 0 : i32
    %c0_i32_0 = arith.constant 0 : i32
    %c0_i32_1 = arith.constant 0 : i32
    return %c0_i32, %c0_i32_0 : i32, i32
  }
  func.func @transform_3(%arg0: i32) -> (i32, i32) {
    %c0_i32 = arith.constant 0 : i32
    %c0_i32_0 = arith.constant 0 : i32
    %c0_i32_1 = arith.constant 0 : i32
    return %c0_i32, %c0_i32_0 : i32, i32
  }
  func.func @transform_4(%arg0: i32) -> (i32, i32) {
    %c0_i32 = arith.constant 0 : i32
    %c0_i32_0 = arith.constant 0 : i32
    %c0_i32_1 = arith.constant 0 : i32
    return %c0_i32, %c0_i32_0 : i32, i32
  }
  func.func @transform_5(%arg0: i32) -> (i32, i32) {
    %c0_i32 = arith.constant 0 : i32
    %c0_i32_0 = arith.constant 0 : i32
    %c0_i32_1 = arith.constant 0 : i32
    return %c0_i32, %c0_i32_0 : i32, i32
  }
  func.func @transform_6(%arg0: i32) -> (i32, i32, i32) {
    %c0_i32 = arith.constant 0 : i32
    %c0_i32_0 = arith.constant 0 : i32
    %c0_i32_1 = arith.constant 0 : i32
    return %arg0, %c0_i32, %c0_i32_0 : i32, i32, i32
  }
}

</mosaic_0001>

<llo_original>
// kernel: tpu_custom_call.1
$region0: #{tpu_custom_call.1}
  #allocation0 [shape = 'u32[]', space=smem, size = 0x4, offset = 0x4, fixed_abs, tag = 'smem constant byte address 0x4 - core index']
  #allocation1 [shape = 'u32[144,128]{1,0:T(1,128)}', space=vmem, size = 0x12000, scoped, tag = 'internal scratch']
  #allocation2 [shape = 'f32[152,256]{1,0:T(8,128)}', space=vmem, size = 0x26000, scoped, tag = 'scratch operand']
  %s0 = inlined_call_operand.vmem [shape: f32[16,512], index: 0, kind: input, shape index: {}]
  %s1 = inlined_call_operand.vmem [shape: f32[9,256], index: 1, kind: input, shape index: {}]
  %s2 = inlined_call_operand.vmem [shape: f32[16,152], index: 2, kind: input, shape index: {}]
  %s3 = inlined_call_operand.vmem [shape: f32[8,16], index: 3, kind: input, shape index: {}]
  %s4 = inlined_call_operand.vmem [shape: f32[8,1], index: 4, kind: input, shape index: {}]
  %s5 = inlined_call_operand.vmem [shape: f32[256,1], index: 5, kind: input, shape index: {}]
  %s6 = inlined_call_operand.vmem [shape: f32[2,8,1], index: 6, kind: output, shape index: {}]
  %s7 = sld [smem:[#allocation0]]
  $region80: #{tpu_custom_call.1} parent=0
    _
  %s9 = ssub.s32 1, %s7
  %s10 = scalar_select 0, %s9, %s7
  $region1: #{tpu_custom_call.1} parent=0
    #allocation3 [shape = 'u8[32768]{0}', space=vmem, size = 0x8000, scoped, tag = 'input window, operand 0']
    loop: start=0, step=1, limit=4
    $region2: #{tpu_custom_call.1} parent=1 // loop_pre_header
      _
    $region3: #{tpu_custom_call.1} parent=1 // loop_header
      %s12 = sphi 0, %s16
      %p13 = scmp.ge.s32.totalorder %s12, 4
      %s22 = sphi 0, %s24
      %s25 = sphi 0, %s22
      %s26 = sphi 0, %s25
      %s42 = sphi 0, %s26
      %s46 = sphi 0, %s46
      %s48 = sphi 0, %s46
      %s49 = sphi 0, %s48
      %s63 = sphi 0, %s49
      %s67 = sphi 0, %s67
      %s69 = sphi 0, %s67
      %s70 = sphi 0, %s69
      %s84 = sphi 0, %s70
      %s88 = sphi 0, %s88
      %s90 = sphi 0, %s88
      %s91 = sphi 0, %s90
      %s105 = sphi 0, %s91
      %s109 = sphi 0, %s109
      %s111 = sphi 0, %s109
      %s112 = sphi 0, %s111
      %s126 = sphi 0, %s112
      %s130 = sphi 0, %s130
      %s132 = sphi 0, %s130
      %s133 = sphi 0, %s132
      %s147 = sphi 0, %s133
      %s153 = sphi 0, %s155
      %s156 = sphi 0, %s153
      %s157 = sphi 0, %s156
      %s173 = sphi 0, %s157
    $region4: #{tpu_custom_call.1} parent=1 // loop_header_branch
      %15 = sbr.rel (%p13) target = $region8
    $region5: #{tpu_custom_call.1} parent=1 // loop_body
      %s17 = ssub.s32 %s12, 1
      %s18 = ssub.s32 %s12, 2
      %s19 = sadd.s32 %s12, 1
      %s20 = ssub.s32 %s12, %s19
      %p21 = scmp.eq.s32.totalorder %s20, 0
      %s23 = sadd.s32 %s22, 1
      %s24 = scalar_select %p21, %s22, %s23
      %p27 = pneg %p21
      %p28 = scmp.eq.s32.totalorder %s12, 1
      %p29 = por %p27, %p28
      %p30 = scmp.ne.s32.totalorder %s22, %s25
      %p31 = scmp.eq.s32.totalorder %s12, 0
      %p32 = por %p30, %p31
      %p33 = scmp.ne.s32.totalorder %s22, %s25
      %p34 = scmp.eq.s32.totalorder %s17, 1
      %p35 = por %p33, %p34
      %p36 = scmp.ne.s32.totalorder %s25, %s26
      %p37 = scmp.eq.s32.totalorder %s17, 0
      %p38 = por %p36, %p37
      %p39 = scmp.ne.s32.totalorder %s25, %s26
      %p40 = scmp.eq.s32.totalorder %s18, 1
      %p41 = por %p39, %p40
      %p43 = scmp.ne.s32.totalorder %s26, %s42
      %p44 = scmp.eq.s32.totalorder %s18, 0
      %p45 = por %p43, %p44
      %s47 = sadd.s32 %s46, 1
      %p50 = scmp.eq.s32.totalorder %s12, 1
      %p51 = scmp.ne.s32.totalorder %s46, %s48
      %p52 = scmp.eq.s32.totalorder %s12, 0
      %p53 = por %p51, %p52
      %p54 = scmp.ne.s32.totalorder %s46, %s48
      %p55 = scmp.eq.s32.totalorder %s17, 1
      %p56 = por %p54, %p55
      %p57 = scmp.ne.s32.totalorder %s48, %s49
      %p58 = scmp.eq.s32.totalorder %s17, 0
      %p59 = por %p57, %p58
      %p60 = scmp.ne.s32.totalorder %s48, %s49
      %p61 = scmp.eq.s32.totalorder %s18, 1
      %p62 = por %p60, %p61
      %p64 = scmp.ne.s32.totalorder %s49, %s63
      %p65 = scmp.eq.s32.totalorder %s18, 0
      %p66 = por %p64, %p65
      %s68 = sadd.s32 %s67, 1
      %p71 = scmp.eq.s32.totalorder %s12, 1
      %p72 = scmp.ne.s32.totalorder %s67, %s69
      %p73 = scmp.eq.s32.totalorder %s12, 0
      %p74 = por %p72, %p73
      %p75 = scmp.ne.s32.totalorder %s67, %s69
      %p76 = scmp.eq.s32.totalorder %s17, 1
      %p77 = por %p75, %p76
      %p78 = scmp.ne.s32.totalorder %s69, %s70
      %p79 = scmp.eq.s32.totalorder %s17, 0
      %p80 = por %p78, %p79
      %p81 = scmp.ne.s32.totalorder %s69, %s70
      %p82 = scmp.eq.s32.totalorder %s18, 1
      %p83 = por %p81, %p82
      %p85 = scmp.ne.s32.totalorder %s70, %s84
      %p86 = scmp.eq.s32.totalorder %s18, 0
      %p87 = por %p85, %p86
      %s89 = sadd.s32 %s88, 1
      %p92 = scmp.eq.s32.totalorder %s12, 1
      %p93 = scmp.ne.s32.totalorder %s88, %s90
      %p94 = scmp.eq.s32.totalorder %s12, 0
      %p95 = por %p93, %p94
      %p96 = scmp.ne.s32.totalorder %s88, %s90
      %p97 = scmp.eq.s32.totalorder %s17, 1
      %p98 = por %p96, %p97
      %p99 = scmp.ne.s32.totalorder %s90, %s91
      %p100 = scmp.eq.s32.totalorder %s17, 0
      %p101 = por %p99, %p100
      %p102 = scmp.ne.s32.totalorder %s90, %s91
      %p103 = scmp.eq.s32.totalorder %s18, 1
      %p104 = por %p102, %p103
      %p106 = scmp.ne.s32.totalorder %s91, %s105
      %p107 = scmp.eq.s32.totalorder %s18, 0
      %p108 = por %p106, %p107
      %s110 = sadd.s32 %s109, 1
      %p113 = scmp.eq.s32.totalorder %s12, 1
      %p114 = scmp.ne.s32.totalorder %s109, %s111
      %p115 = scmp.eq.s32.totalorder %s12, 0
      %p116 = por %p114, %p115
      %p117 = scmp.ne.s32.totalorder %s109, %s111
      %p118 = scmp.eq.s32.totalorder %s17, 1
      %p119 = por %p117, %p118
      %p120 = scmp.ne.s32.totalorder %s111, %s112
      %p121 = scmp.eq.s32.totalorder %s17, 0
      %p122 = por %p120, %p121
      %p123 = scmp.ne.s32.totalorder %s111, %s112
      %p124 = scmp.eq.s32.totalorder %s18, 1
      %p125 = por %p123, %p124
      %p127 = scmp.ne.s32.totalorder %s112, %s126
      %p128 = scmp.eq.s32.totalorder %s18, 0
      %p129 = por %p127, %p128
      %s131 = sadd.s32 %s130, 1
      %p134 = scmp.eq.s32.totalorder %s12, 1
      %p135 = scmp.ne.s32.totalorder %s130, %s132
      %p136 = scmp.eq.s32.totalorder %s12, 0
      %p137 = por %p135, %p136
      %p138 = scmp.ne.s32.totalorder %s130, %s132
      %p139 = scmp.eq.s32.totalorder %s17, 1
      %p140 = por %p138, %p139
      %p141 = scmp.ne.s32.totalorder %s132, %s133
      %p142 = scmp.eq.s32.totalorder %s17, 0
      %p143 = por %p141, %p142
      %p144 = scmp.ne.s32.totalorder %s132, %s133
      %p145 = scmp.eq.s32.totalorder %s18, 1
      %p146 = por %p144, %p145
      %p148 = scmp.ne.s32.totalorder %s133, %s147
      %p149 = scmp.eq.s32.totalorder %s18, 0
      %p150 = por %p148, %p149
      %s151 = ssub.s32 %s12, %s19
      %p152 = scmp.eq.s32.totalorder %s151, 0
      %s154 = sadd.s32 %s153, 1
      %s155 = scalar_select %p152, %s153, %s154
      %p158 = pneg %p152
      %p159 = scmp.eq.s32.totalorder %s12, 1
      %p160 = por %p158, %p159
      %p161 = scmp.ne.s32.totalorder %s153, %s156
      %p162 = scmp.eq.s32.totalorder %s12, 0
      %p163 = por %p161, %p162
      %p164 = scmp.ne.s32.totalorder %s153, %s156
      %p165 = scmp.eq.s32.totalorder %s17, 1
      %p166 = por %p164, %p165
      %p167 = scmp.ne.s32.totalorder %s156, %s157
      %p168 = scmp.eq.s32.totalorder %s17, 0
      %p169 = por %p167, %p168
      %p170 = scmp.ne.s32.totalorder %s156, %s157
      %p171 = scmp.eq.s32.totalorder %s18, 1
      %p172 = por %p170, %p171
      %p174 = scmp.ne.s32.totalorder %s157, %s173
      %p175 = scmp.eq.s32.totalorder %s18, 0
      %p176 = por %p174, %p175
      %p177 = scmp.le.s32.totalorder 1, %s12
      %p178 = scmp.lt.s32.totalorder %s12, 3
      %p179 = pnand %p177, %p178
      %p180 = pneg %p179
      // Predicated region
      $region9: #{tpu_custom_call.1} parent=5 // pred_check
        _
      $region10: #{tpu_custom_call.1} parent=5 // pred_check_branch
        %182 = sbr.rel (%p179) target = $region12
      $region11: #{tpu_custom_call.1} parent=5 // pred_region
        %s183 = ssub.s32 %s12, 1
        // Predicated region
        $region13: #{tpu_custom_call.1} parent=11 // pred_check
          %p184 = pneg %p59
        $region14: #{tpu_custom_call.1} parent=11 // pred_check_branch
          %186 = sbr.rel (%p184) target = $region16
        $region15: #{tpu_custom_call.1} parent=11 // pred_region
          _
        $region16: #{tpu_custom_call.1} parent=11 // pred_fallthru
          _
        // Predicated region
        $region17: #{tpu_custom_call.1} parent=11 // pred_check
          %p187 = pneg %p80
        $region18: #{tpu_custom_call.1} parent=11 // pred_check_branch
          %189 = sbr.rel (%p187) target = $region20
        $region19: #{tpu_custom_call.1} parent=11 // pred_region
          _
        $region20: #{tpu_custom_call.1} parent=11 // pred_fallthru
          _
        // Predicated region
        $region21: #{tpu_custom_call.1} parent=11 // pred_check
          %p190 = pneg %p101
        $region22: #{tpu_custom_call.1} parent=11 // pred_check_branch
          %192 = sbr.rel (%p190) target = $region24
        $region23: #{tpu_custom_call.1} parent=11 // pred_region
          _
        $region24: #{tpu_custom_call.1} parent=11 // pred_fallthru
          _
        // Predicated region
        $region25: #{tpu_custom_call.1} parent=11 // pred_check
          %p193 = pneg %p122
        $region26: #{tpu_custom_call.1} parent=11 // pred_check_branch
          %195 = sbr.rel (%p193) target = $region28
        $region27: #{tpu_custom_call.1} parent=11 // pred_region
          _
        $region28: #{tpu_custom_call.1} parent=11 // pred_fallthru
          _
        // Predicated region
        $region29: #{tpu_custom_call.1} parent=11 // pred_check
          %p196 = pneg %p143
        $region30: #{tpu_custom_call.1} parent=11 // pred_check_branch
          %198 = sbr.rel (%p196) target = $region32
        $region31: #{tpu_custom_call.1} parent=11 // pred_region
          _
        $region32: #{tpu_custom_call.1} parent=11 // pred_fallthru
          _
      $region12: #{tpu_custom_call.1} parent=5 // pred_fallthru
        _
      %p199 = scmp.lt.s32.totalorder %s12, 2
      // Predicated region
      $region33: #{tpu_custom_call.1} parent=5 // pred_check
        %p200 = pneg %p199
      $region34: #{tpu_custom_call.1} parent=5 // pred_check_branch
        %202 = sbr.rel (%p200) target = $region36
      $region35: #{tpu_custom_call.1} parent=5 // pred_region
        // Predicated region
        $region37: #{tpu_custom_call.1} parent=35 // pred_check
          %p203 = pneg %p32
        $region38: #{tpu_custom_call.1} parent=35 // pred_check_branch
          %205 = sbr.rel (%p203) target = $region40
        $region39: #{tpu_custom_call.1} parent=35 // pred_region
          %s206 = sand.u32 %s22, 1
          %s207 = sand.u32 %s22, 1
          %s208 = smul.addr %s207, 32
          %s209 = scalar_lea.vmem [#allocation3], %s208
          %s210 = smul.u32 2, %s12
          %s211 = smul.addr %s210, 8
          %s212 = scalar_lea.vmem %s0, %s211
          // Predicated region
          $region41: #{tpu_custom_call.1} parent=39 // pred_check
            _
          $region42: #{tpu_custom_call.1} parent=39 // pred_check_branch
            %214 = sbr.rel (0) target = $region44
          $region43: #{tpu_custom_call.1} parent=39 // pred_region
            // Predicated region
            $region45: #{tpu_custom_call.1} parent=43 // pred_check
              _
            $region46: #{tpu_custom_call.1} parent=43 // pred_check_branch
              %216 = sbr.rel (0) target = $region48
            $region47: #{tpu_custom_call.1} parent=43 // pred_region
              loop: start=0, step=1, limit=1
              $region49: #{tpu_custom_call.1} parent=47 // loop_pre_header
                _
              $region50: #{tpu_custom_call.1} parent=47 // loop_header
                %s218 = sphi 0, %s222
                %p219 = scmp.ge.s32.totalorder %s218, 1
                %s223 = sphi %s212, %s212
                %s224 = sphi %s209, %s209
              $region51: #{tpu_custom_call.1} parent=47 // loop_header_branch
                %221 = sbr.rel (%p219) target = $region55
              $region52: #{tpu_custom_call.1} parent=47 // loop_body
                %v225 = vld [vmem:[%s223] sm:$0xff]
                %226 = vst [vmem:[%s224] sm:$0xff] %v225
                %v227 = vld [vmem:[%s223 + $0x8] sm:$0xff]
                %228 = vst [vmem:[%s224 + $0x8] sm:$0xff] %v227
                %v229 = vld [vmem:[%s223 + $0x20] sm:$0xff]
                %230 = vst [vmem:[%s224 + $0x10] sm:$0xff] %v229
                %v231 = vld [vmem:[%s223 + $0x28] sm:$0xff]
                %232 = vst [vmem:[%s224 + $0x18] sm:$0xff] %v231
              $region53: #{tpu_custom_call.1} parent=47 // loop_footer
                %s222 = sadd.s32 1, %s218
              $region54: #{tpu_custom_call.1} parent=47 // loop_footer_branch
                %217 = sbr.rel target = $region50
              $region55: #{tpu_custom_call.1} parent=47 // loop_exit
                _
            $region48: #{tpu_custom_call.1} parent=43 // pred_fallthru
              _
            // Predicated region
            $region56: #{tpu_custom_call.1} parent=43 // pred_check
              _
            $region57: #{tpu_custom_call.1} parent=43 // pred_check_branch
              %234 = sbr.rel target = $region59
            $region58: #{tpu_custom_call.1} parent=43 // pred_region
              _
            $region59: #{tpu_custom_call.1} parent=43 // pred_fallthru
              _
          $region44: #{tpu_custom_call.1} parent=39 // pred_fallthru
            _
          %235 = vnop
        $region40: #{tpu_custom_call.1} parent=35 // pred_fallthru
          _
      $region36: #{tpu_custom_call.1} parent=5 // pred_fallthru
        _
      %p236 = scmp.le.s32.totalorder 1, %s12
      %p237 = scmp.lt.s32.totalorder %s12, 3
      %p238 = pnand %p236, %p237
      %p239 = pneg %p238
      // Predicated region
      $region60: #{tpu_custom_call.1} parent=5 // pred_check
        _
      $region61: #{tpu_custom_call.1} parent=5 // pred_check_branch
        %241 = sbr.rel (%p238) target = $region63
      $region62: #{tpu_custom_call.1} parent=5 // pred_region
        %s242 = ssub.s32 %s12, 1
        %s243 = sand.u32 %s25, 1
        %s244 = sand.u32 %s25, 1
        %s245 = smul.addr %s244, 32
        %s246 = scalar_lea.vmem [#allocation3], %s245
        // Predicated region
        $region64: #{tpu_custom_call.1} parent=62 // pred_check
          %p247 = pneg %p38
        $region65: #{tpu_custom_call.1} parent=62 // pred_check_branch
          %249 = sbr.rel (%p247) target = $region67
        $region66: #{tpu_custom_call.1} parent=62 // pred_region
          _
        $region67: #{tpu_custom_call.1} parent=62 // pred_fallthru
          _
        %s250 = sand.u32 %s25, 1
        %s251 = sand.u32 %s25, 1
        %s252 = smul.addr %s251, 32
        %s253 = scalar_lea.vmem [#allocation3], %s252
        %p254 = pneg %p38
        %p255 = pneg %p35
        %p256 = pneg %p59
        %p257 = pneg %p56
        %p258 = pneg %p80
        %p259 = pneg %p77
        %p260 = pneg %p101
        %p261 = pneg %p98
        %p262 = pneg %p122
        %p263 = pneg %p119
        %p264 = pneg %p143
        %p265 = pneg %p140
        %p266 = pneg %p169
        %p267 = pneg %p166
        %p268 = scmp.lt.s32.totalorder %s17, 1
        %s269 = scalar_select %p268, %s17, 1
        %s270 = smul.addr %s269, 8
        %s271 = scalar_lea.vmem %s6, %s270
        %s272 = smul.u32 2, %s17
        %p273 = scmp.lt.s32.totalorder %s17, 1
        %s274 = scalar_select %p273, %s17, 1
        %s275 = smul.addr %s274, 8
        %s276 = scalar_lea.vmem %s6, %s275
        %v277 = vld [vmem:[%s246] sm:$0xff]
        %v278 = vld [vmem:[%s246 + $0x8] sm:$0xff]
        %v279 = vld [vmem:[%s246 + $0x10] sm:$0xff]
        %v280 = vld [vmem:[%s246 + $0x18] sm:$0xff]
        %281 = vrot.lane.b32.xlu0 %v277, 1
        %v282 = vpop.permute.xlu0 %281
        %283 = vrot.lane.b32.xlu0 %v279, 1
        %v284 = vpop.permute.xlu0 %283
        %285 = vrot.lane.b32.xlu0 %v278, 1
        %v286 = vpop.permute.xlu0 %285
        %287 = vrot.lane.b32.xlu0 %v280, 1
        %v288 = vpop.permute.xlu0 %287
        %v289 = vlaneseq
        %v290 = vand.u32 %v289, 127
        %vm291 = vcmp.lt.s32.totalorder %v290, 1
        %v292 = vsel %vm291, %v282, %v286
        %v293 = vsel %vm291, %v284, %v288
        %v294 = vsel %vm291, %v286, %v282
        %v295 = vsel %vm291, %v288, %v284
        %v296 = vld [vmem:[%s1] ss:$8 sm:$0x3]
        %v298 = vlaneseq
        %v299 = vshrl.u32 %v298, 7
        %v300 = vsub.s32 0, %v299
        %v301 = vrot.slane %v296, %v300
        %v302 = vlaneseq
        %v303 = vshrl.u32 %v302, 7
        %v304 = vsub.s32 1, %v303
        %v305 = vrot.slane %v296, %v304
        %v308 = vmul.f32 %v294, %v301
        %v309 = vmul.f32 %v292, %v305
        %v310 = vmul.f32 %v295, %v301
        %v311 = vmul.f32 %v293, %v305
        %312 = vst [vmem:[#allocation2] sm:$0xff] %v308
        %313 = vst [vmem:[#allocation2 + $0x8] sm:$0xff] %v309
        %314 = vst [vmem:[#allocation2 + $0x10] sm:$0xff] %v310
        %315 = vst [vmem:[#allocation2 + $0x18] sm:$0xff] %v311
        %316 = vst [vmem:[#allocation2 + $0x20] sm:$0xff] %v277
        %317 = vst [vmem:[#allocation2 + $0x28] sm:$0xff] %v278
        %318 = vst [vmem:[#allocation2 + $0x30] sm:$0xff] %v279
        %319 = vst [vmem:[#allocation2 + $0x38] sm:$0xff] %v280
        %320 = vrot.lane.b32.xlu0 %v277, 127
        %v321 = vpop.permute.xlu0 %320
        %322 = vrot.lane.b32.xlu0 %v279, 127
        %v323 = vpop.permute.xlu0 %322
        %324 = vrot.lane.b32.xlu0 %v278, 127
        %v325 = vpop.permute.xlu0 %324
        %326 = vrot.lane.b32.xlu0 %v280, 127
        %v327 = vpop.permute.xlu0 %326
        %vm328 = vcmp.lt.s32.totalorder %v290, 127
        %v329 = vsel %vm328, %v321, %v325
        %v330 = vsel %vm328, %v323, %v327
        %v331 = vsel %vm328, %v325, %v321
        %v332 = vsel %vm328, %v327, %v323
        %s333 = scalar_lea.vmem %s1, 2
        %v334 = vld [vmem:[%s333] ss:$8 sm:$0x3]
        %v336 = vlaneseq
        %v337 = vshrl.u32 %v336, 7
        %v338 = vsub.s32 0, %v337
        %v339 = vrot.slane %v334, %v338
        %v340 = vlaneseq
        %v341 = vshrl.u32 %v340, 7
        %v342 = vsub.s32 1, %v341
        %v343 = vrot.slane %v334, %v342
        %v346 = vmul.f32 %v329, %v339
        %v347 = vmul.f32 %v331, %v343
        %v348 = vmul.f32 %v330, %v339
        %v349 = vmul.f32 %v332, %v343
        %350 = vst [vmem:[#allocation2 + $0x40] sm:$0xff] %v346
        %351 = vst [vmem:[#allocation2 + $0x48] sm:$0xff] %v347
        %352 = vst [vmem:[#allocation2 + $0x50] sm:$0xff] %v348
        %353 = vst [vmem:[#allocation2 + $0x58] sm:$0xff] %v349
        %354 = vrot.lane.b32.xlu0 %v277, 16
        %v355 = vpop.permute.xlu0 %354
        %356 = vrot.lane.b32.xlu0 %v279, 16
        %v357 = vpop.permute.xlu0 %356
        %358 = vrot.lane.b32.xlu0 %v278, 16
        %v359 = vpop.permute.xlu0 %358
        %360 = vrot.lane.b32.xlu0 %v280, 16
        %v361 = vpop.permute.xlu0 %360
        %vm362 = vcmp.lt.s32.totalorder %v290, 16
        %v363 = vsel %vm362, %v355, %v359
        %v364 = vsel %vm362, %v357, %v361
        %v365 = vsel %vm362, %v359, %v355
        %v366 = vsel %vm362, %v361, %v357
        %s367 = scalar_lea.vmem %s1, 3
        %v368 = vld [vmem:[%s367] ss:$8 sm:$0x3]
        %v370 = vlaneseq
        %v371 = vshrl.u32 %v370, 7
        %v372 = vsub.s32 0, %v371
        %v373 = vrot.slane %v368, %v372
        %v374 = vlaneseq
        %v375 = vshrl.u32 %v374, 7
        %v376 = vsub.s32 1, %v375
        %v377 = vrot.slane %v368, %v376
        %v380 = vmul.f32 %v365, %v373
        %v381 = vmul.f32 %v363, %v377
        %v382 = vmul.f32 %v366, %v373
        %v383 = vmul.f32 %v364, %v377
        %384 = vst [vmem:[#allocation2 + $0x60] sm:$0xff] %v380
        %385 = vst [vmem:[#allocation2 + $0x68] sm:$0xff] %v381
        %386 = vst [vmem:[#allocation2 + $0x70] sm:$0xff] %v382
        %387 = vst [vmem:[#allocation2 + $0x78] sm:$0xff] %v383
        %388 = vrot.lane.b32.xlu0 %v277, 112
        %v389 = vpop.permute.xlu0 %388
        %390 = vrot.lane.b32.xlu0 %v279, 112
        %v391 = vpop.permute.xlu0 %390
        %392 = vrot.lane.b32.xlu0 %v278, 112
        %v393 = vpop.permute.xlu0 %392
        %394 = vrot.lane.b32.xlu0 %v280, 112
        %v395 = vpop.permute.xlu0 %394
        %vm396 = vcmp.lt.s32.totalorder %v290, 112
        %v397 = vsel %vm396, %v389, %v393
        %v398 = vsel %vm396, %v391, %v395
        %v399 = vsel %vm396, %v393, %v389
        %v400 = vsel %vm396, %v395, %v391
        %s401 = scalar_lea.vmem %s1, 4
        %v402 = vld [vmem:[%s401] ss:$8 sm:$0x3]
        %v404 = vlaneseq
        %v405 = vshrl.u32 %v404, 7
        %v406 = vsub.s32 0, %v405
        %v407 = vrot.slane %v402, %v406
        %v408 = vlaneseq
        %v409 = vshrl.u32 %v408, 7
        %v410 = vsub.s32 1, %v409
        %v411 = vrot.slane %v402, %v410
        %v414 = vmul.f32 %v397, %v407
        %v415 = vmul.f32 %v399, %v411
        %v416 = vmul.f32 %v398, %v407
        %v417 = vmul.f32 %v400, %v411
        %418 = vst [vmem:[#allocation2 + $0x80] sm:$0xff] %v414
        %419 = vst [vmem:[#allocation2 + $0x88] sm:$0xff] %v415
        %420 = vst [vmem:[#allocation2 + $0x90] sm:$0xff] %v416
        %421 = vst [vmem:[#allocation2 + $0x98] sm:$0xff] %v417
        %422 = vrot.lane.b32.xlu0 %v277, 2
        %v423 = vpop.permute.xlu0 %422
        %424 = vrot.lane.b32.xlu0 %v279, 2
        %v425 = vpop.permute.xlu0 %424
        %426 = vrot.lane.b32.xlu0 %v278, 2
        %v427 = vpop.permute.xlu0 %426
        %428 = vrot.lane.b32.xlu0 %v280, 2
        %v429 = vpop.permute.xlu0 %428
        %vm430 = vcmp.lt.s32.totalorder %v290, 2
        %v431 = vsel %vm430, %v423, %v427
        %v432 = vsel %vm430, %v425, %v429
        %v433 = vsel %vm430, %v427, %v423
        %v434 = vsel %vm430, %v429, %v425
        %s435 = scalar_lea.vmem %s1, 5
        %v436 = vld [vmem:[%s435] ss:$8 sm:$0x3]
        %v438 = vlaneseq
        %v439 = vshrl.u32 %v438, 7
        %v440 = vsub.s32 0, %v439
        %v441 = vrot.slane %v436, %v440
        %v442 = vlaneseq
        %v443 = vshrl.u32 %v442, 7
        %v444 = vsub.s32 1, %v443
        %v445 = vrot.slane %v436, %v444
        %v448 = vmul.f32 %v433, %v441
        %v449 = vmul.f32 %v431, %v445
        %v450 = vmul.f32 %v434, %v441
        %v451 = vmul.f32 %v432, %v445
        %452 = vst [vmem:[#allocation2 + $0xa0] sm:$0xff] %v448
        %453 = vst [vmem:[#allocation2 + $0xa8] sm:$0xff] %v449
        %454 = vst [vmem:[#allocation2 + $0xb0] sm:$0xff] %v450
        %455 = vst [vmem:[#allocation2 + $0xb8] sm:$0xff] %v451
        %456 = vrot.lane.b32.xlu0 %v277, 126
        %v457 = vpop.permute.xlu0 %456
        %458 = vrot.lane.b32.xlu0 %v279, 126
        %v459 = vpop.permute.xlu0 %458
        %460 = vrot.lane.b32.xlu0 %v278, 126
        %v461 = vpop.permute.xlu0 %460
        %462 = vrot.lane.b32.xlu0 %v280, 126
        %v463 = vpop.permute.xlu0 %462
        %vm464 = vcmp.lt.s32.totalorder %v290, 126
        %v465 = vsel %vm464, %v457, %v461
        %v466 = vsel %vm464, %v459, %v463
        %v467 = vsel %vm464, %v461, %v457
        %v468 = vsel %vm464, %v463, %v459
        %s469 = scalar_lea.vmem %s1, 6
        %v470 = vld [vmem:[%s469] ss:$8 sm:$0x3]
        %v472 = vlaneseq
        %v473 = vshrl.u32 %v472, 7
        %v474 = vsub.s32 0, %v473
        %v475 = vrot.slane %v470, %v474
        %v476 = vlaneseq
        %v477 = vshrl.u32 %v476, 7
        %v478 = vsub.s32 1, %v477
        %v479 = vrot.slane %v470, %v478
        %v482 = vmul.f32 %v465, %v475
        %v483 = vmul.f32 %v467, %v479
        %v484 = vmul.f32 %v466, %v475
        %v485 = vmul.f32 %v468, %v479
        %486 = vst [vmem:[#allocation2 + $0xc0] sm:$0xff] %v482
        %487 = vst [vmem:[#allocation2 + $0xc8] sm:$0xff] %v483
        %488 = vst [vmem:[#allocation2 + $0xd0] sm:$0xff] %v484
        %489 = vst [vmem:[#allocation2 + $0xd8] sm:$0xff] %v485
        %490 = vrot.lane.b32.xlu0 %v277, 32
        %v491 = vpop.permute.xlu0 %490
        %492 = vrot.lane.b32.xlu0 %v279, 32
        %v493 = vpop.permute.xlu0 %492
        %494 = vrot.lane.b32.xlu0 %v278, 32
        %v495 = vpop.permute.xlu0 %494
        %496 = vrot.lane.b32.xlu0 %v280, 32
        %v497 = vpop.permute.xlu0 %496
        %vm498 = vcmp.lt.s32.totalorder %v290, 32
        %v499 = vsel %vm498, %v491, %v495
        %v500 = vsel %vm498, %v493, %v497
        %v501 = vsel %vm498, %v495, %v491
        %v502 = vsel %vm498, %v497, %v493
        %s503 = scalar_lea.vmem %s1, 7
        %v504 = vld [vmem:[%s503] ss:$8 sm:$0x3]
        %v506 = vlaneseq
        %v507 = vshrl.u32 %v506, 7
        %v508 = vsub.s32 0, %v507
        %v509 = vrot.slane %v504, %v508
        %v510 = vlaneseq
        %v511 = vshrl.u32 %v510, 7
        %v512 = vsub.s32 1, %v511
        %v513 = vrot.slane %v504, %v512
        %v516 = vmul.f32 %v501, %v509
        %v517 = vmul.f32 %v499, %v513
        %v518 = vmul.f32 %v502, %v509
        %v519 = vmul.f32 %v500, %v513
        %520 = vst [vmem:[#allocation2 + $0xe0] sm:$0xff] %v516
        %521 = vst [vmem:[#allocation2 + $0xe8] sm:$0xff] %v517
        %522 = vst [vmem:[#allocation2 + $0xf0] sm:$0xff] %v518
        %523 = vst [vmem:[#allocation2 + $0xf8] sm:$0xff] %v519
        %524 = vrot.lane.b32.xlu0 %v277, 96
        %v525 = vpop.permute.xlu0 %524
        %526 = vrot.lane.b32.xlu0 %v279, 96
        %v527 = vpop.permute.xlu0 %526
        %528 = vrot.lane.b32.xlu0 %v278, 96
        %v529 = vpop.permute.xlu0 %528
        %530 = vrot.lane.b32.xlu0 %v280, 96
        %v531 = vpop.permute.xlu0 %530
        %vm532 = vcmp.lt.s32.totalorder %v290, 96
        %v533 = vsel %vm532, %v525, %v529
        %v534 = vsel %vm532, %v527, %v531
        %v535 = vsel %vm532, %v529, %v525
        %v536 = vsel %vm532, %v531, %v527
        %s537 = scalar_lea.vmem %s1, 16
        %v538 = vld [vmem:[%s537] ss:$8 sm:$0x3]
        %v540 = vlaneseq
        %v541 = vshrl.u32 %v540, 7
        %v542 = vsub.s32 0, %v541
        %v543 = vrot.slane %v538, %v542
        %v544 = vlaneseq
        %v545 = vshrl.u32 %v544, 7
        %v546 = vsub.s32 1, %v545
        %v547 = vrot.slane %v538, %v546
        %v550 = vmul.f32 %v533, %v543
        %v551 = vmul.f32 %v535, %v547
        %v552 = vmul.f32 %v534, %v543
        %v553 = vmul.f32 %v536, %v547
        %554 = vst [vmem:[#allocation2 + $0x100] sm:$0xff] %v550
        %555 = vst [vmem:[#allocation2 + $0x108] sm:$0xff] %v551
        %556 = vst [vmem:[#allocation2 + $0x110] sm:$0xff] %v552
        %557 = vst [vmem:[#allocation2 + $0x118] sm:$0xff] %v553
        %v558 = vlaneseq
        %v559 = vshrl.u32 %v558, 7
        %vm560 = vcmp.eq.s32.totalorder %v559, 0
        %v561 = vsel %vm560, 1, 0
        %v562 = vcvt.s32.f32 %v561
        %563 = vst [vmem:[#allocation2 + $0x120] sm:$0xff] %v562
        %564 = vst [vmem:[#allocation2 + $0x128] sm:$0xff] %v562
        %v565 = vld [vmem:[%s2] sm:$0xff]
        %v566 = vld [vmem:[%s2 + $0x8] sm:$0xff]
        %v567 = vld [vmem:[%s2 + $0x10] sm:$0xff]
        %v568 = vld [vmem:[%s2 + $0x18] sm:$0xff]
        %v569 = vld [vmem:[#allocation2] sm:$0xff]
        %v570 = vld [vmem:[#allocation2 + $0x8] sm:$0xff]
        %v571 = vld [vmem:[#allocation2 + $0x10] sm:$0xff]
        %v572 = vld [vmem:[#allocation2 + $0x18] sm:$0xff]
        %v573 = vld [vmem:[#allocation2 + $0x20] sm:$0xff]
        %v574 = vld [vmem:[#allocation2 + $0x28] sm:$0xff]
        %v575 = vld [vmem:[#allocation2 + $0x30] sm:$0xff]
        %v576 = vld [vmem:[#allocation2 + $0x38] sm:$0xff]
        %v577 = vld [vmem:[#allocation2 + $0x40] sm:$0xff]
        %v578 = vld [vmem:[#allocation2 + $0x48] sm:$0xff]
        %v579 = vld [vmem:[#allocation2 + $0x50] sm:$0xff]
        %v580 = vld [vmem:[#allocation2 + $0x58] sm:$0xff]
        %v581 = vld [vmem:[#allocation2 + $0x60] sm:$0xff]
        %v582 = vld [vmem:[#allocation2 + $0x68] sm:$0xff]
        %v583 = vld [vmem:[#allocation2 + $0x70] sm:$0xff]
        %v584 = vld [vmem:[#allocation2 + $0x78] sm:$0xff]
        %v585 = vld [vmem:[#allocation2 + $0x80] sm:$0xff]
        %v586 = vld [vmem:[#allocation2 + $0x88] sm:$0xff]
        %v587 = vld [vmem:[#allocation2 + $0x90] sm:$0xff]
        %v588 = vld [vmem:[#allocation2 + $0x98] sm:$0xff]
        %v589 = vld [vmem:[#allocation2 + $0xa0] sm:$0xff]
        %v590 = vld [vmem:[#allocation2 + $0xa8] sm:$0xff]
        %v591 = vld [vmem:[#allocation2 + $0xb0] sm:$0xff]
        %v592 = vld [vmem:[#allocation2 + $0xb8] sm:$0xff]
        %v593 = vld [vmem:[#allocation2 + $0xc0] sm:$0xff]
        %v594 = vld [vmem:[#allocation2 + $0xc8] sm:$0xff]
        %v595 = vld [vmem:[#allocation2 + $0xd0] sm:$0xff]
        %v596 = vld [vmem:[#allocation2 + $0xd8] sm:$0xff]
        %v597 = vld [vmem:[#allocation2 + $0xe0] sm:$0xff]
        %v598 = vld [vmem:[#allocation2 + $0xe8] sm:$0xff]
        %v599 = vld [vmem:[#allocation2 + $0xf0] sm:$0xff]
        %v600 = vld [vmem:[#allocation2 + $0xf8] sm:$0xff]
        %v601 = vld [vmem:[#allocation2 + $0x100] sm:$0xff]
        %v602 = vld [vmem:[#allocation2 + $0x108] sm:$0xff]
        %v603 = vld [vmem:[#allocation2 + $0x110] sm:$0xff]
        %v604 = vld [vmem:[#allocation2 + $0x118] sm:$0xff]
        %v605 = vld [vmem:[#allocation2 + $0x120] sm:$0xff]
        %v606 = vld [vmem:[#allocation2 + $0x128] sm:$0xff]
        %vm607 = vcmask 195584
        %v609 = vsel %vm607, %v566, 0
        %v612 = vsel %vm607, %v568, 0
        %614 = vmatprep.subr.mxu0 %v570
        %615 = vmatpush1.msra.mxu0 %v569
        %616 = vmatprep.subr.mxu0 %v572
        %617 = vmatpush1.msra.mxu0 %v571
        %618 = vmatprep.subr.mxu0 %v574
        %619 = vmatpush1.msra.mxu0 %v573
        %620 = vmatprep.subr.mxu0 %v576
        %621 = vmatpush1.msra.mxu0 %v575
        %622 = vmatprep.subr.mxu0 %v578
        %623 = vmatpush1.msra.mxu0 %v577
        %624 = vmatprep.subr.mxu0 %v580
        %625 = vmatpush1.msra.mxu0 %v579
        %626 = vmatprep.subr.mxu0 %v582
        %627 = vmatpush1.msra.mxu0 %v581
        %628 = vmatprep.subr.mxu0 %v584
        %629 = vmatpush1.msra.mxu0 %v583
        %630 = vmatprep.subr.mxu0 %v586
        %631 = vmatpush1.msra.mxu0 %v585
        %632 = vmatprep.subr.mxu0 %v588
        %633 = vmatpush1.msra.mxu0 %v587
        %634 = vmatprep.subr.mxu0 %v590
        %635 = vmatpush1.msra.mxu0 %v589
        %636 = vmatprep.subr.mxu0 %v592
        %637 = vmatpush1.msra.mxu0 %v591
        %638 = vmatprep.subr.mxu0 %v594
        %639 = vmatpush1.msra.mxu0 %v593
        %640 = vmatprep.subr.mxu0 %v596
        %641 = vmatpush1.msra.mxu0 %v595
        %642 = vmatprep.subr.mxu0 %v598
        %643 = vmatpush1.msra.mxu0 %v597
        %644 = vmatprep.subr.mxu0 %v600
        %645 = vmatpush1.msra.mxu0 %v599
        %646 = vmatprep.subr.mxu0 %v602
        %647 = vmatpush1.msra.mxu0 %v601
        %648 = vmatprep.subr.mxu0 %v604
        %649 = vmatpush1.msra.mxu0 %v603
        %650 = vmatprep.subr.mxu0 %v606
        %651 = vmatpush1.msra.mxu0 %v605
        %652 = vmatprep.subr.mxu0 0.0
        %653 = vmatpush1.msra.mxu0 0.0
        %654 = vmatprep.subr.mxu0 0.0
        %655 = vmatpush1.msra.mxu0 0.0
        %656 = vmatprep.subr.mxu0 0.0
        %657 = vmatpush1.msra.mxu0 0.0
        %658 = vmatprep.subr.mxu0 0.0
        %659 = vmatpush1.msra.mxu0 0.0
        %660 = vmatprep.subr.mxu0 0.0
        %661 = vmatpush1.msra.mxu0 0.0
        %662 = vmatprep.subr.mxu0 0.0
        %663 = vmatpush1.msra.mxu0 0.0
        %664 = vmatprep.subr.mxu0 0.0
        %665 = vmatpush1.msra.mxu0 0.0
        %666 = vmatprep.subr.mxu0 0.0
        %667 = vmatpush1.msra.mxu0 0.0
        %668 = vmatprep.subr.mxu0 0.0
        %669 = vmatpush1.msra.mxu0 0.0
        %670 = vmatprep.subr.mxu0 0.0
        %671 = vmatpush1.msra.mxu0 0.0
        %672 = vmatprep.subr.mxu0 0.0
        %673 = vmatpush1.msra.mxu0 0.0
        %674 = vmatprep.subr.mxu0 0.0
        %675 = vmatpush1.msra.mxu0 0.0
        %676 = vmatprep.subr.mxu0 0.0
        %677 = vmatpush1.msra.mxu0 0.0
        %678 = vmatprep.mubr.f32.mxu0 %v609
        %679 = vmatmul.mubr.f32.gmra.mrb[0].mxu0 %v565
        %v680 = vpop.f32.mrb[0].mxu0
        %v681 = vadd.f32 0.0, %v680
        %v682 = vpop.f32.mrb[0].mxu0
        %v683 = vadd.f32 0.0, %v682
        %684 = vmatprep.mubr.f32.mxu0 %v612
        %685 = vmatmul.mubr.f32.gmra.mrb[0].mxu0 %v567
        %v686 = vpop.f32.mrb[0].mxu0
        %v687 = vadd.f32 0.0, %v686
        %v688 = vpop.f32.mrb[0].mxu0
        %v689 = vadd.f32 0.0, %v688
        %690 = vdwg.mxu0
        %v691 = vmax.f32 %v681, 0.0
        %v692 = vmax.f32 %v683, 0.0
        %v693 = vmax.f32 %v687, 0.0
        %v694 = vmax.f32 %v689, 0.0
        %v695 = vld [vmem:[%s5] sm:$0xff]
        %v696 = vld [vmem:[%s5 + $0x8] sm:$0xff]
        %v697 = vld [vmem:[%s5 + $0x10] sm:$0xff]
        %v698 = vld [vmem:[%s5 + $0x18] sm:$0xff]
        %v699 = vld [vmem:[%s5 + $0x20] sm:$0xff]
        %v700 = vld [vmem:[%s5 + $0x28] sm:$0xff]
        %v701 = vld [vmem:[%s5 + $0x30] sm:$0xff]
        %v702 = vld [vmem:[%s5 + $0x38] sm:$0xff]
        %v703 = vld [vmem:[%s5 + $0x40] sm:$0xff]
        %v704 = vld [vmem:[%s5 + $0x48] sm:$0xff]
        %v705 = vld [vmem:[%s5 + $0x50] sm:$0xff]
        %v706 = vld [vmem:[%s5 + $0x58] sm:$0xff]
        %v707 = vld [vmem:[%s5 + $0x60] sm:$0xff]
        %v708 = vld [vmem:[%s5 + $0x68] sm:$0xff]
        %v709 = vld [vmem:[%s5 + $0x70] sm:$0xff]
        %v710 = vld [vmem:[%s5 + $0x78] sm:$0xff]
        %v711 = vld [vmem:[%s5 + $0x80] sm:$0xff]
        %v712 = vld [vmem:[%s5 + $0x88] sm:$0xff]
        %v713 = vld [vmem:[%s5 + $0x90] sm:$0xff]
        %v714 = vld [vmem:[%s5 + $0x98] sm:$0xff]
        %v715 = vld [vmem:[%s5 + $0xa0] sm:$0xff]
        %v716 = vld [vmem:[%s5 + $0xa8] sm:$0xff]
        %v717 = vld [vmem:[%s5 + $0xb0] sm:$0xff]
        %v718 = vld [vmem:[%s5 + $0xb8] sm:$0xff]
        %v719 = vld [vmem:[%s5 + $0xc0] sm:$0xff]
        %v720 = vld [vmem:[%s5 + $0xc8] sm:$0xff]
        %v721 = vld [vmem:[%s5 + $0xd0] sm:$0xff]
        %v722 = vld [vmem:[%s5 + $0xd8] sm:$0xff]
        %v723 = vld [vmem:[%s5 + $0xe0] sm:$0xff]
        %v724 = vld [vmem:[%s5 + $0xe8] sm:$0xff]
        %v725 = vld [vmem:[%s5 + $0xf0] sm:$0xff]
        %v726 = vld [vmem:[%s5 + $0xf8] sm:$0xff]
        %727 = vmatprep.subr.mxu0 0.0
        %728 = vmatpush1.msra.mxu0 %v695
        %729 = vmatprep.subr.mxu0 0.0
        %730 = vmatpush1.msra.mxu0 %v696
        %731 = vmatprep.subr.mxu0 0.0
        %732 = vmatpush1.msra.mxu0 %v697
        %733 = vmatprep.subr.mxu0 0.0
        %734 = vmatpush1.msra.mxu0 %v698
        %735 = vmatprep.subr.mxu0 0.0
        %736 = vmatpush1.msra.mxu0 %v699
        %737 = vmatprep.subr.mxu0 0.0
        %738 = vmatpush1.msra.mxu0 %v700
        %739 = vmatprep.subr.mxu0 0.0
        %740 = vmatpush1.msra.mxu0 %v701
        %741 = vmatprep.subr.mxu0 0.0
        %742 = vmatpush1.msra.mxu0 %v702
        %743 = vmatprep.subr.mxu0 0.0
        %744 = vmatpush1.msra.mxu0 %v703
        %745 = vmatprep.subr.mxu0 0.0
        %746 = vmatpush1.msra.mxu0 %v704
        %747 = vmatprep.subr.mxu0 0.0
        %748 = vmatpush1.msra.mxu0 %v705
        %749 = vmatprep.subr.mxu0 0.0
        %750 = vmatpush1.msra.mxu0 %v706
        %751 = vmatprep.subr.mxu0 0.0
        %752 = vmatpush1.msra.mxu0 %v707
        %753 = vmatprep.subr.mxu0 0.0
        %754 = vmatpush1.msra.mxu0 %v708
        %755 = vmatprep.subr.mxu0 0.0
        %756 = vmatpush1.msra.mxu0 %v709
        %757 = vmatprep.subr.mxu0 0.0
        %758 = vmatpush1.msra.mxu0 %v710
        %759 = vmatprep.subr.mxu0 0.0
        %760 = vmatpush1.msra.mxu0 %v711
        %761 = vmatprep.subr.mxu0 0.0
        %762 = vmatpush1.msra.mxu0 %v712
        %763 = vmatprep.subr.mxu0 0.0
        %764 = vmatpush1.msra.mxu0 %v713
        %765 = vmatprep.subr.mxu0 0.0
        %766 = vmatpush1.msra.mxu0 %v714
        %767 = vmatprep.subr.mxu0 0.0
        %768 = vmatpush1.msra.mxu0 %v715
        %769 = vmatprep.subr.mxu0 0.0
        %770 = vmatpush1.msra.mxu0 %v716
        %771 = vmatprep.subr.mxu0 0.0
        %772 = vmatpush1.msra.mxu0 %v717
        %773 = vmatprep.subr.mxu0 0.0
        %774 = vmatpush1.msra.mxu0 %v718
        %775 = vmatprep.subr.mxu0 0.0
        %776 = vmatpush1.msra.mxu0 %v719
        %777 = vmatprep.subr.mxu0 0.0
        %778 = vmatpush1.msra.mxu0 %v720
        %779 = vmatprep.subr.mxu0 0.0
        %780 = vmatpush1.msra.mxu0 %v721
        %781 = vmatprep.subr.mxu0 0.0
        %782 = vmatpush1.msra.mxu0 %v722
        %783 = vmatprep.subr.mxu0 0.0
        %784 = vmatpush1.msra.mxu0 %v723
        %785 = vmatprep.subr.mxu0 0.0
        %786 = vmatpush1.msra.mxu0 %v724
        %787 = vmatprep.subr.mxu0 0.0
        %788 = vmatpush1.msra.mxu0 %v725
        %789 = vmatprep.subr.mxu0 0.0
        %790 = vmatpush1.msra.mxu0 %v726
        %791 = vmatprep.mubr.f32.mxu0 %v692
        %792 = vmatmul.mubr.f32.gmra.mrb[0].mxu0 %v691
        %v793 = vpop.f32.mrb[0].mxu0
        %v794 = vadd.f32 0.0, %v793
        %v795 = vpop.f32.mrb[0].mxu0
        %796 = vmatprep.mubr.f32.mxu0 %v694
        %797 = vmatmul.mubr.f32.gmra.mrb[0].mxu0 %v693
        %v798 = vpop.f32.mrb[0].mxu0
        %v799 = vadd.f32 0.0, %v798
        %v800 = vpop.f32.mrb[0].mxu0
        %801 = vdwg.mxu0
        %v802 = vld [vmem:[%s3] sm:$0xff]
        %v803 = vld [vmem:[%s4] sm:$0xff]
        %vm804 = vcmask 130048
        %v806 = vsel %vm804, %v802, 0
        %808 = vmatprep.subr.mxu0 0.0
        %809 = vmatpush1.msra.mxu0 %v794
        %810 = vmatprep.subr.mxu0 0.0
        %811 = vmatpush1.msra.mxu0 %v799
        %812 = vmatprep.subr.mxu0 0.0
        %813 = vmatpush1.msra.mxu0 0.0
        %814 = vmatprep.subr.mxu0 0.0
        %815 = vmatpush1.msra.mxu0 0.0
        %816 = vmatprep.subr.mxu0 0.0
        %817 = vmatpush1.msra.mxu0 0.0
        %818 = vmatprep.subr.mxu0 0.0
        %819 = vmatpush1.msra.mxu0 0.0
        %820 = vmatprep.subr.mxu0 0.0
        %821 = vmatpush1.msra.mxu0 0.0
        %822 = vmatprep.subr.mxu0 0.0
        %823 = vmatpush1.msra.mxu0 0.0
        %824 = vmatprep.subr.mxu0 0.0
        %825 = vmatpush1.msra.mxu0 0.0
        %826 = vmatprep.subr.mxu0 0.0
        %827 = vmatpush1.msra.mxu0 0.0
        %828 = vmatprep.subr.mxu0 0.0
        %829 = vmatpush1.msra.mxu0 0.0
        %830 = vmatprep.subr.mxu0 0.0
        %831 = vmatpush1.msra.mxu0 0.0
        %832 = vmatprep.subr.mxu0 0.0
        %833 = vmatpush1.msra.mxu0 0.0
        %834 = vmatprep.subr.mxu0 0.0
        %835 = vmatpush1.msra.mxu0 0.0
        %836 = vmatprep.subr.mxu0 0.0
        %837 = vmatpush1.msra.mxu0 0.0
        %838 = vmatprep.subr.mxu0 0.0
        %839 = vmatpush1.msra.mxu0 0.0
        %840 = vmatprep.subr.mxu0 0.0
        %841 = vmatpush1.msra.mxu0 0.0
        %842 = vmatprep.subr.mxu0 0.0
        %843 = vmatpush1.msra.mxu0 0.0
        %844 = vmatprep.subr.mxu0 0.0
        %845 = vmatpush1.msra.mxu0 0.0
        %846 = vmatprep.subr.mxu0 0.0
        %847 = vmatpush1.msra.mxu0 0.0
        %848 = vmatprep.subr.mxu0 0.0
        %849 = vmatpush1.msra.mxu0 0.0
        %850 = vmatprep.subr.mxu0 0.0
        %851 = vmatpush1.msra.mxu0 0.0
        %852 = vmatprep.subr.mxu0 0.0
        %853 = vmatpush1.msra.mxu0 0.0
        %854 = vmatprep.subr.mxu0 0.0
        %855 = vmatpush1.msra.mxu0 0.0
        %856 = vmatprep.subr.mxu0 0.0
        %857 = vmatpush1.msra.mxu0 0.0
        %858 = vmatprep.subr.mxu0 0.0
        %859 = vmatpush1.msra.mxu0 0.0
        %860 = vmatprep.subr.mxu0 0.0
        %861 = vmatpush1.msra.mxu0 0.0
        %862 = vmatprep.subr.mxu0 0.0
        %863 = vmatpush1.msra.mxu0 0.0
        %864 = vmatprep.subr.mxu0 0.0
        %865 = vmatpush1.msra.mxu0 0.0
        %866 = vmatprep.subr.mxu0 0.0
        %867 = vmatpush1.msra.mxu0 0.0
        %868 = vmatprep.subr.mxu0 0.0
        %869 = vmatpush1.msra.mxu0 0.0
        %870 = vmatprep.subr.mxu0 0.0
        %871 = vmatpush1.msra.mxu0 0.0
        %872 = vmatprep.mubr.f32.mxu0 0.0
        %873 = vmatmul.mubr.f32.gmra.mrb[0].mxu0 %v806
        %v874 = vpop.f32.mrb[0].mxu0
        %v875 = vadd.f32 %v803, %v874
        %v876 = vpop.f32.mrb[0].mxu0
        %877 = vdwg.mxu0
        %vm878 = vcmask 7168
        %879 = vst.msk [vmem:[%s276] sm:$0xff] %vm878, %v875
        %p880 = scmp.lt.s32.totalorder %s17, 1
        %s881 = scalar_select %p880, %s17, 1
        %s882 = smul.addr %s881, 8
        %s883 = scalar_lea.vmem %s6, %s882
        // Predicated region
        $region68: #{tpu_custom_call.1} parent=62 // pred_check
          %p884 = pneg %p166
        $region69: #{tpu_custom_call.1} parent=62 // pred_check_branch
          %886 = sbr.rel (%p884) target = $region71
        $region70: #{tpu_custom_call.1} parent=62 // pred_region
          _
        $region71: #{tpu_custom_call.1} parent=62 // pred_fallthru
          _
      $region63: #{tpu_custom_call.1} parent=5 // pred_fallthru
        _
      %p887 = scmp.le.s32.totalorder 2, %s12
      // Predicated region
      $region72: #{tpu_custom_call.1} parent=5 // pred_check
        %p888 = pneg %p887
      $region73: #{tpu_custom_call.1} parent=5 // pred_check_branch
        %890 = sbr.rel (%p888) target = $region75
      $region74: #{tpu_custom_call.1} parent=5 // pred_region
        %s891 = ssub.s32 %s12, 2
        // Predicated region
        $region76: #{tpu_custom_call.1} parent=74 // pred_check
          %p892 = pneg %p172
        $region77: #{tpu_custom_call.1} parent=74 // pred_check_branch
          %894 = sbr.rel (%p892) target = $region79
        $region78: #{tpu_custom_call.1} parent=74 // pred_region
          %p895 = scmp.lt.s32.totalorder %s18, 1
          %s896 = scalar_select %p895, %s18, 1
          %s897 = smul.addr %s896, 8
          %s898 = scalar_lea.vmem %s6, %s897
        $region79: #{tpu_custom_call.1} parent=74 // pred_fallthru
          _
      $region75: #{tpu_custom_call.1} parent=5 // pred_fallthru
        _
    $region6: #{tpu_custom_call.1} parent=1 // loop_footer
      %s16 = sadd.s32 1, %s12
    $region7: #{tpu_custom_call.1} parent=1 // loop_footer_branch
      %11 = sbr.rel target = $region3
    $region8: #{tpu_custom_call.1} parent=1 // loop_exit
      _

</llo_original>
